<compile_context>
chip_gen: v7x
topology: tpu7x:2x2x1
jax: 0.10.0
libtpu: 0.0.40
codegen_flags: <defaults>
</compile_context>

<pallas_src>
import jax
import jax.numpy as jnp
import numpy as np
from jax import lax
from jax.experimental import pallas as pl
from jax.experimental.pallas import tpu as pltpu


# ----------------------------- parameter setup ------------------------------

def prewitt_kernel():
    # (K, K) Prewitt kernel, same as piqa.prewitt_kernel()
    return jnp.array([[1.0, 0.0, -1.0]] * 3, dtype=jnp.float32) / 3.0


def gradient_kernel(k):
    # (2, 1, K, K): channel 0 = k, channel 1 = k^T  (piqa.gradient_kernel)
    return jnp.stack([k, k.T])[:, None, :, :]


# RGB -> Y luminance weights (first row of piqa's RGB_TO_YIQ matrix)
RGB_TO_Y = jnp.array([0.299, 0.587, 0.114], dtype=jnp.float32)


def _round_up(x, m):
    return ((x + m - 1) // m) * m


# ------------------------------ Pallas kernel -------------------------------

def _make_gmsd_kernel(B, H2, W2, Wc, c9, alpha):
    """Per-block GMSD kernel. Block holds B padded luminance images.

    B:   images per grid step
    H2:  pooled height (valid rows)
    W2:  pooled width  (valid cols)
    Wc:  lane-aligned compute width (multiple of 128, >= W2)
    c9:  9 * c * value_range**2  (folds the squared 1/3 Prewitt scale)
    """
    n = float(H2 * W2)
    inv_n = 1.0 / n
    inv_nm1 = 1.0 / (n - 1.0)

    def kernel(xp_ref, yp_ref, mask_ref, out_ref):
        # xp_ref / yp_ref: (B, Hp, Ws) zero-padded luminance, f32, VMEM
        #                  (row 0 = top halo, col 0 = left halo, rest padding)
        # mask_ref:        (1, 1, Wc) f32 column-validity mask (grid invariant)
        # out_ref:         (B, 1, 128) per-image GMSD (broadcast over lanes)

        def grad_sq(ref):
            # Separable, constant-folded Prewitt gradients (unscaled by 1/3):
            #   g0[i,j] = sum_r (z[i+r, j] - z[i+r, j+2])   (vert-sum, [1,0,-1])
            #   g1[i,j] = sum_c (z[i, j+c] - z[i+2, j+c])   (vert-diff, 3-tap sum)
            z0 = ref[:, 0:H2, :]          # rows i      (B, H2, Ws)
            z1 = ref[:, 1:H2 + 1, :]      # rows i+1
            z2 = ref[:, 2:H2 + 2, :]      # rows i+2
            vsum = z0 + z1 + z2
            g0 = vsum[:, :, 0:Wc] - vsum[:, :, 2:Wc + 2]
            dz = z0 - z2
            g1 = (dz[:, :, 0:Wc] + dz[:, :, 1:Wc + 1] + dz[:, :, 2:Wc + 2])
            return g0 * g0 + g1 * g1      # = 9 * GM(z)^2       (B, H2, Wc)

        mx2 = grad_sq(xp_ref)
        my2 = grad_sq(yp_ref)
        gm_xy = jnp.sqrt(mx2 * my2)       # single sqrt: 9 * GM(x) * GM(y)
        num = (2.0 - alpha) * gm_xy + c9
        den = mx2 + my2 + c9
        if alpha > 0.0:
            den = den - alpha * gm_xy
        # Approx reciprocal on the (idle) EUP slot + one Newton-Raphson step.
        r = pl.reciprocal(den, approx=True)
        r = r * (2.0 - den * r)
        gms = num * r

        # Single-pass masked std (ddof=1). gms == 1 + O(eps) in the all-zero
        # padded region, so accumulate d = (gms - 1) * mask to avoid
        # cancellation while keeping one full-size pass over gms.
        mask = mask_ref[...]              # (1, 1, Wc), broadcasts over (B, H2)
        d = (gms - 1.0) * mask

        def rsum(v):  # sum over the last two axes, keepdims
            return jnp.sum(jnp.sum(v, axis=-1, keepdims=True),
                           axis=-2, keepdims=True)

        s1 = rsum(d)                      # (B, 1, 1)
        s2 = rsum(d * d)                  # (B, 1, 1)
        var = (s2 - s1 * s1 * inv_n) * inv_nm1
        std = jnp.sqrt(jnp.maximum(var, 0.0))
        out_ref[...] = jnp.broadcast_to(std, out_ref.shape)

    return kernel


# ------------------------------- JAX wrapper ---------------------------------

def _pool_and_luminance(z, N, H2, W2):
    # avg_pool2d(kernel=2, stride=2) via reshape-mean (even H, W), RGB -> Y
    z = z.reshape(N, 3, H2, 2, W2, 2).mean(axis=(3, 5))
    return jnp.tensordot(RGB_TO_Y, z, axes=([0], [1]),
                         precision=lax.Precision.HIGHEST)   # (N, H2, W2)


def gmsd_pallas(x, y, kernel=None, value_range=1.0,
                c=170.0 / 255.0 ** 2, alpha=0.0, max_block_n=8):
    """x, y: (N, 3, H, W) float32 in [0, value_range]. Returns (N,) GMSD."""
    N, C, H, W = x.shape
    assert C == 3
    # TODO(synk): ceil_mode avg_pool2d for odd H/W not handled; even sizes only.
    assert H % 2 == 0 and W % 2 == 0

    if kernel is not None:
        ref_k = np.asarray(gradient_kernel(prewitt_kernel()))
        if not np.allclose(np.asarray(kernel), ref_k):
            raise NotImplementedError(
                "Pallas GMSD hard-codes the separable Prewitt kernel.")

    c9 = 9.0 * c * value_range ** 2   # folds the squared 1/3 Prewitt scale

    H2, W2 = H // 2, W // 2
    Wc = _round_up(W2, 128)           # lane-aligned compute width
    Ws = Wc + 128                     # stored width: multiple of 128, holds
                                      # the 1-col left halo + right halo/pad
    Hp = _round_up(H2 + 2, 8)         # stored height: sublane aligned

    # ---- VMEM budget: size B against the physical per-core capacity --------
    try:
        vmem_phys = int(pltpu.get_tpu_info().vmem_capacity_bytes)
    except Exception:
        vmem_phys = 64 << 20          # conservative fallback (v7x per-TC)
    budget = int(vmem_phys * 0.85)

    in_bytes_per_img = 2 * 2 * Hp * Ws * 4      # x + y, double-buffered blocks
    tmp_bytes_per_img = 12 * H2 * Ws * 4        # live f32 intermediates (est.)
    per_img = in_bytes_per_img + tmp_bytes_per_img
    b_cap = max(1, (budget - (2 << 20)) // per_img)

    B = int(min(N, max_block_n, b_cap))
    # Keep >= min(4, N) grid steps so v7x's second TensorCore gets work and the
    # input pipeline stays double-buffered even for small batches.
    target_steps = min(4, N)
    if target_steps > 0:
        B = max(1, min(B, N // target_steps))
    Npad = _round_up(N, B)

    def prep(z):
        # TODO(synk): fuse pool/RGB->Y/pad into the kernel (v5e HBM traffic).
        lum = _pool_and_luminance(z, N, H2, W2)
        # zero pad: 1 halo row top, halo+align bottom; 1 halo col left,
        # halo+align right; batch pad to a multiple of B.
        lum = jnp.pad(lum, ((0, Npad - N), (1, Hp - 1 - H2), (1, Ws - 1 - W2)))
        return lum.astype(jnp.float32)

    xp, yp = prep(x), prep(y)
    col_mask = (jnp.arange(Wc) < W2).astype(jnp.float32).reshape(1, 1, Wc)

    # Only raise the scoped VMEM limit when the estimate actually needs it,
    # and never above ~85% of the physical per-core capacity.
    need = B * per_img + (2 << 20)
    cp_kwargs = dict(dimension_semantics=("parallel",))
    if need > (16 << 20):
        cp_kwargs["vmem_limit_bytes"] = int(min(budget, need))

    out = pl.pallas_call(
        _make_gmsd_kernel(B, H2, W2, Wc, float(c9), float(alpha)),
        out_shape=jax.ShapeDtypeStruct((Npad, 1, 128), jnp.float32),
        grid_spec=pltpu.PrefetchScalarGridSpec(
            num_scalar_prefetch=0,
            grid=(Npad // B,),
            in_specs=[
                pl.BlockSpec((B, Hp, Ws), lambda nb: (nb, 0, 0)),   # x padded
                pl.BlockSpec((B, Hp, Ws), lambda nb: (nb, 0, 0)),   # y padded
                pl.BlockSpec((1, 1, Wc), lambda nb: (0, 0, 0)),     # col mask
            ],
            out_specs=pl.BlockSpec((B, 1, 128), lambda nb: (nb, 0, 0)),
        ),
        compiler_params=pltpu.CompilerParams(**cp_kwargs),
    )(xp, yp, col_mask)
    # TODO(synk): row-tile H2 (inner "arbitrary" grid axis with a 2-row halo +
    # streaming sum/sumsq accumulators) so a single huge image never exceeds
    # the per-core VMEM budget (v7x 64 MiB physical).
    return out[:N, 0, 0]


class GMSDPallas:
    """Mirror of piqa.GMSD forward (avg_pool2d(2) -> RGB->Y -> gmsd -> reduce)."""

    def __init__(self, kernel=None, reduction="mean", value_range=1.0,
                 c=170.0 / 255.0 ** 2, alpha=0.0):
        if kernel is None:
            kernel = gradient_kernel(prewitt_kernel())
        self.kernel = kernel
        self.reduction = reduction
        self.value_range = value_range
        self.c = c
        self.alpha = alpha

    def __call__(self, x, y):
        l = gmsd_pallas(x, y, kernel=self.kernel, value_range=self.value_range,
                        c=self.c, alpha=self.alpha)
        if self.reduction == "mean":
            return jnp.mean(l)
        if self.reduction == "sum":
            return jnp.sum(l)
        return l


# -------------------------- pure-JAX reference check -------------------------

def gmsd_reference(x, y, kernel, value_range=1.0, c=170.0 / 255.0 ** 2, alpha=0.0):
    c = c * value_range ** 2
    N, _, H, W = x.shape
    H2, W2 = H // 2, W // 2
    pad = kernel.shape[-1] // 2

    xs = _pool_and_luminance(x, N, H2, W2)[:, None]   # (N,1,H2,W2)
    ys = _pool_and_luminance(y, N, H2, W2)[:, None]

    def gm(z):
        g = lax.conv_general_dilated(
            z, kernel, (1, 1), [(pad, pad), (pad, pad)],
            dimension_numbers=("NCHW", "OIHW", "NCHW"),
            precision=lax.Precision.HIGHEST)
        return jnp.sqrt(jnp.sum(g * g, axis=1))

    gm_x, gm_y = gm(xs), gm(ys)
    gm_xy = gm_x * gm_y
    num = (2.0 - alpha) * gm_xy + c
    den = gm_x ** 2 + gm_y ** 2 + c
    if alpha > 0.0:
        den = den - alpha * gm_xy
    gms = num / den
    return jnp.std(gms, axis=(-1, -2), ddof=1)


# ---------------------------------- main -------------------------------------

if __name__ == "__main__":
    key = jax.random.PRNGKey(0)
    kx, ky = jax.random.split(key)
    N, C, H, W = 2, 3, 16, 16
    x = jax.random.uniform(kx, (N, C, H, W), dtype=jnp.float32)
    y = jax.random.uniform(ky, (N, C, H, W), dtype=jnp.float32)

    criterion = GMSDPallas(reduction="mean")
    out = jax.block_until_ready(criterion(x, y))

    ref = jnp.mean(gmsd_reference(x, y, criterion.kernel))
    np.testing.assert_allclose(np.asarray(out), np.asarray(ref),
                               rtol=1e-5, atol=1e-5)
    print("KERNEL_OK")
</pallas_src>

<mosaic_0001>
module attributes {stable_mosaic.version = 11 : i64} {
  func.func @kernel(%arg0: i32, %arg1: memref<1x16x256xf32, #tpu.memory_space<vmem>>, %arg2: memref<1x16x256xf32, #tpu.memory_space<vmem>>, %arg3: memref<1x1x128xf32, #tpu.memory_space<vmem>>, %arg4: memref<1x1x128xf32, #tpu.memory_space<vmem>>) attributes {dimension_semantics = [#tpu.dimension_semantics<parallel>], iteration_bounds = array<i64: 2>, scalar_prefetch = 0 : i64, scratch_operands = 0 : i64, tpu.core_type = #tpu.core_type<tc>, window_params = [{transform_indices = @transform_0, window_bounds = array<i64: 1, 16, 256>}, {transform_indices = @transform_1, window_bounds = array<i64: 1, 16, 256>}, {pipeline_mode = #tpu.pipeline_mode<synchronous>, transform_indices = @transform_2, window_bounds = array<i64: 1, 1, 128>}, {transform_indices = @transform_3, window_bounds = array<i64: 1, 1, 128>}]} {
    %c0 = arith.constant 0 : index
    %c0_0 = arith.constant 0 : index
    %c0_1 = arith.constant 0 : index
    %0 = vector.load %arg1[%c0, %c0_0, %c0_1] : memref<1x16x256xf32, #tpu.memory_space<vmem>>, vector<1x8x256xf32>
    %c0_2 = arith.constant 0 : index
    %c1 = arith.constant 1 : index
    %c0_3 = arith.constant 0 : index
    %1 = vector.load %arg1[%c0_2, %c1, %c0_3] : memref<1x16x256xf32, #tpu.memory_space<vmem>>, vector<1x8x256xf32>
    %c0_4 = arith.constant 0 : index
    %c2 = arith.constant 2 : index
    %c0_5 = arith.constant 0 : index
    %2 = vector.load %arg1[%c0_4, %c2, %c0_5] : memref<1x16x256xf32, #tpu.memory_space<vmem>>, vector<1x8x256xf32>
    %3 = arith.addf %0, %1 : vector<1x8x256xf32>
    %4 = arith.addf %3, %2 : vector<1x8x256xf32>
    %5 = vector.extract_strided_slice %4 {offsets = [0, 0, 0], sizes = [1, 8, 128], strides = [1, 1, 1]} : vector<1x8x256xf32> to vector<1x8x128xf32>
    %6 = vector.extract_strided_slice %4 {offsets = [0, 0, 2], sizes = [1, 8, 128], strides = [1, 1, 1]} : vector<1x8x256xf32> to vector<1x8x128xf32>
    %7 = arith.subf %5, %6 : vector<1x8x128xf32>
    %8 = arith.subf %0, %2 : vector<1x8x256xf32>
    %9 = vector.extract_strided_slice %8 {offsets = [0, 0, 0], sizes = [1, 8, 128], strides = [1, 1, 1]} : vector<1x8x256xf32> to vector<1x8x128xf32>
    %10 = vector.extract_strided_slice %8 {offsets = [0, 0, 1], sizes = [1, 8, 128], strides = [1, 1, 1]} : vector<1x8x256xf32> to vector<1x8x128xf32>
    %11 = arith.addf %9, %10 : vector<1x8x128xf32>
    %12 = vector.extract_strided_slice %8 {offsets = [0, 0, 2], sizes = [1, 8, 128], strides = [1, 1, 1]} : vector<1x8x256xf32> to vector<1x8x128xf32>
    %13 = arith.addf %11, %12 : vector<1x8x128xf32>
    %14 = arith.mulf %7, %7 : vector<1x8x128xf32>
    %15 = arith.mulf %13, %13 : vector<1x8x128xf32>
    %16 = arith.addf %14, %15 : vector<1x8x128xf32>
    %c0_6 = arith.constant 0 : index
    %c0_7 = arith.constant 0 : index
    %c0_8 = arith.constant 0 : index
    %17 = vector.load %arg2[%c0_6, %c0_7, %c0_8] : memref<1x16x256xf32, #tpu.memory_space<vmem>>, vector<1x8x256xf32>
    %c0_9 = arith.constant 0 : index
    %c1_10 = arith.constant 1 : index
    %c0_11 = arith.constant 0 : index
    %18 = vector.load %arg2[%c0_9, %c1_10, %c0_11] : memref<1x16x256xf32, #tpu.memory_space<vmem>>, vector<1x8x256xf32>
    %c0_12 = arith.constant 0 : index
    %c2_13 = arith.constant 2 : index
    %c0_14 = arith.constant 0 : index
    %19 = vector.load %arg2[%c0_12, %c2_13, %c0_14] : memref<1x16x256xf32, #tpu.memory_space<vmem>>, vector<1x8x256xf32>
    %20 = arith.addf %17, %18 : vector<1x8x256xf32>
    %21 = arith.addf %20, %19 : vector<1x8x256xf32>
    %22 = vector.extract_strided_slice %21 {offsets = [0, 0, 0], sizes = [1, 8, 128], strides = [1, 1, 1]} : vector<1x8x256xf32> to vector<1x8x128xf32>
    %23 = vector.extract_strided_slice %21 {offsets = [0, 0, 2], sizes = [1, 8, 128], strides = [1, 1, 1]} : vector<1x8x256xf32> to vector<1x8x128xf32>
    %24 = arith.subf %22, %23 : vector<1x8x128xf32>
    %25 = arith.subf %17, %19 : vector<1x8x256xf32>
    %26 = vector.extract_strided_slice %25 {offsets = [0, 0, 0], sizes = [1, 8, 128], strides = [1, 1, 1]} : vector<1x8x256xf32> to vector<1x8x128xf32>
    %27 = vector.extract_strided_slice %25 {offsets = [0, 0, 1], sizes = [1, 8, 128], strides = [1, 1, 1]} : vector<1x8x256xf32> to vector<1x8x128xf32>
    %28 = arith.addf %26, %27 : vector<1x8x128xf32>
    %29 = vector.extract_strided_slice %25 {offsets = [0, 0, 2], sizes = [1, 8, 128], strides = [1, 1, 1]} : vector<1x8x256xf32> to vector<1x8x128xf32>
    %30 = arith.addf %28, %29 : vector<1x8x128xf32>
    %31 = arith.mulf %24, %24 : vector<1x8x128xf32>
    %32 = arith.mulf %30, %30 : vector<1x8x128xf32>
    %33 = arith.addf %31, %32 : vector<1x8x128xf32>
    %34 = arith.mulf %16, %33 : vector<1x8x128xf32>
    %35 = math.sqrt %34 : vector<1x8x128xf32>
    %cst = arith.constant 2.000000e+00 : f32
    %36 = vector.broadcast %cst : f32 to vector<1x8x128xf32>
    %37 = arith.mulf %36, %35 : vector<1x8x128xf32>
    %cst_15 = arith.constant 0.0235294122 : f32
    %38 = vector.broadcast %cst_15 : f32 to vector<1x8x128xf32>
    %39 = arith.addf %37, %38 : vector<1x8x128xf32>
    %40 = arith.addf %16, %33 : vector<1x8x128xf32>
    %cst_16 = arith.constant 0.0235294122 : f32
    %41 = vector.broadcast %cst_16 : f32 to vector<1x8x128xf32>
    %42 = arith.addf %40, %41 : vector<1x8x128xf32>
    %43 = tpu.reciprocal %42 {approx = true} : vector<1x8x128xf32> -> vector<1x8x128xf32>
    %44 = arith.mulf %42, %43 : vector<1x8x128xf32>
    %cst_17 = arith.constant 2.000000e+00 : f32
    %45 = vector.broadcast %cst_17 : f32 to vector<1x8x128xf32>
    %46 = arith.subf %45, %44 : vector<1x8x128xf32>
    %47 = arith.mulf %43, %46 : vector<1x8x128xf32>
    %48 = arith.mulf %39, %47 : vector<1x8x128xf32>
    %c0_18 = arith.constant 0 : index
    %c0_19 = arith.constant 0 : index
    %c0_20 = arith.constant 0 : index
    %49 = vector.load %arg3[%c0_18, %c0_19, %c0_20] : memref<1x1x128xf32, #tpu.memory_space<vmem>>, vector<1x1x128xf32>
    %cst_21 = arith.constant 1.000000e+00 : f32
    %50 = vector.broadcast %cst_21 : f32 to vector<1x8x128xf32>
    %51 = arith.subf %48, %50 : vector<1x8x128xf32>
    %52 = vector.broadcast %49 : vector<1x1x128xf32> to vector<1x8x128xf32>
    %53 = arith.mulf %51, %52 : vector<1x8x128xf32>
    %cst_22 = arith.constant dense<0.000000e+00> : vector<1x8xf32>
    %54 = vector.multi_reduction <add>, %53, %cst_22 [2] : vector<1x8x128xf32> to vector<1x8xf32>
    %55 = vector.shape_cast %54 : vector<1x8xf32> to vector<1x8x1xf32>
    %cst_23 = arith.constant dense<0.000000e+00> : vector<1x1xf32>
    %56 = vector.multi_reduction <add>, %55, %cst_23 [1] : vector<1x8x1xf32> to vector<1x1xf32>
    %57 = vector.shape_cast %56 : vector<1x1xf32> to vector<1x1x1xf32>
    %58 = arith.mulf %53, %53 : vector<1x8x128xf32>
    %cst_24 = arith.constant dense<0.000000e+00> : vector<1x8xf32>
    %59 = vector.multi_reduction <add>, %58, %cst_24 [2] : vector<1x8x128xf32> to vector<1x8xf32>
    %60 = vector.shape_cast %59 : vector<1x8xf32> to vector<1x8x1xf32>
    %cst_25 = arith.constant dense<0.000000e+00> : vector<1x1xf32>
    %61 = vector.multi_reduction <add>, %60, %cst_25 [1] : vector<1x8x1xf32> to vector<1x1xf32>
    %62 = vector.shape_cast %61 : vector<1x1xf32> to vector<1x1x1xf32>
    %63 = arith.mulf %57, %57 : vector<1x1x1xf32>
    %cst_26 = arith.constant 1.562500e-02 : f32
    %64 = vector.broadcast %cst_26 : f32 to vector<1x1x1xf32>
    %65 = arith.mulf %63, %64 : vector<1x1x1xf32>
    %66 = arith.subf %62, %65 : vector<1x1x1xf32>
    %cst_27 = arith.constant 0.0158730168 : f32
    %67 = vector.broadcast %cst_27 : f32 to vector<1x1x1xf32>
    %68 = arith.mulf %66, %67 : vector<1x1x1xf32>
    %cst_28 = arith.constant 0.000000e+00 : f32
    %69 = vector.broadcast %cst_28 : f32 to vector<1x1x1xf32>
    %70 = arith.maximumf %68, %69 : vector<1x1x1xf32>
    %71 = math.sqrt %70 : vector<1x1x1xf32>
    %72 = vector.shape_cast %71 : vector<1x1x1xf32> to vector<1x1x1xf32>
    %73 = vector.broadcast %72 : vector<1x1x1xf32> to vector<1x1x128xf32>
    %c0_29 = arith.constant 0 : index
    %c0_30 = arith.constant 0 : index
    %c0_31 = arith.constant 0 : index
    %74 = vector.load %arg4[%c0_29, %c0_30, %c0_31] : memref<1x1x128xf32, #tpu.memory_space<vmem>>, vector<1x1x128xf32>
    tpu.vector_store %arg4[%c0_29, %c0_30, %c0_31], %73 {strides = array<i32>} : memref<1x1x128xf32, #tpu.memory_space<vmem>>, vector<1x1x128xf32>,
    return
  }
  func.func @transform_0(%arg0: i32) -> (i32, i32, i32) {
    %c0_i32 = arith.constant 0 : i32
    %c0_i32_0 = arith.constant 0 : i32
    %c0_i32_1 = arith.constant 0 : i32
    return %arg0, %c0_i32, %c0_i32_0 : i32, i32, i32
  }
  func.func @transform_1(%arg0: i32) -> (i32, i32, i32) {
    %c0_i32 = arith.constant 0 : i32
    %c0_i32_0 = arith.constant 0 : i32
    %c0_i32_1 = arith.constant 0 : i32
    return %arg0, %c0_i32, %c0_i32_0 : i32, i32, i32
  }
  func.func @transform_2(%arg0: i32) -> (i32, i32, i32) {
    %c0_i32 = arith.constant 0 : i32
    %c0_i32_0 = arith.constant 0 : i32
    %c0_i32_1 = arith.constant 0 : i32
    %c0_i32_2 = arith.constant 0 : i32
    return %c0_i32, %c0_i32_0, %c0_i32_1 : i32, i32, i32
  }
  func.func @transform_3(%arg0: i32) -> (i32, i32, i32) {
    %c0_i32 = arith.constant 0 : i32
    %c0_i32_0 = arith.constant 0 : i32
    %c0_i32_1 = arith.constant 0 : i32
    return %arg0, %c0_i32, %c0_i32_0 : i32, i32, i32
  }
}

</mosaic_0001>

<llo_original>
// kernel: tpu_custom_call.1
$region0: #{tpu_custom_call.1}
  #allocation0 [shape = 'u32[]', space=smem, size = 0x4, offset = 0x4, fixed_abs, tag = 'smem constant byte address 0x4 - core index']
  #allocation1 [shape = 'u32[144,128]{1,0:T(1,128)}', space=vmem, size = 0x12000, scoped, tag = 'internal scratch']
  %s0 = inlined_call_operand.hbm [shape: f32[2,16,256], index: 0, kind: input, shape index: {}]
  %s1 = inlined_call_operand.hbm [shape: f32[2,16,256], index: 1, kind: input, shape index: {}]
  %s2 = inlined_call_operand.vmem [shape: f32[1,1,128], index: 2, kind: input, shape index: {}]
  %s3 = inlined_call_operand.hbm [shape: f32[2,1,128], index: 3, kind: output, shape index: {}]
  %s4 = sld [smem:[#allocation0]]
  $region53: #{tpu_custom_call.1} parent=0
    _
  %s6 = ssub.s32 1, %s4
  %s7 = scalar_select 0, %s6, %s4
  $region1: #{tpu_custom_call.1} parent=0
    #allocation2 [shape = 'u8[32768]{0}', space=vmem, size = 0x8000, scoped, tag = 'input window, operand 0']
    #allocation3 [shape = 's32[2]{0}', space=sflag, size = 0x8, scoped, tag = 'scoped memory for tpu_custom_call.1']
    #allocation4 [shape = 's32[2]{0}', space=sflag, size = 0x8, scoped, tag = 'scoped memory for tpu_custom_call.1']
    #allocation5 [shape = 'u8[32768]{0}', space=vmem, size = 0x8000, scoped, tag = 'input window, operand 1']
    #allocation6 [shape = 's32[2]{0}', space=sflag, size = 0x8, scoped, tag = 'scoped memory for tpu_custom_call.1']
    #allocation7 [shape = 'u8[1024]{0}', space=vmem, size = 0x400, scoped, tag = 'output window, operand 0']
    %8 = vsyncpa [#allocation3], 0
    %s9 = scalar_lea.sflag [#allocation3], 1
    %10 = vsyncpa %s9, 0
    %11 = vsyncpa [#allocation6], 0
    %s12 = scalar_lea.sflag [#allocation6], 1
    %13 = vsyncpa %s12, 0
    %14 = vsyncpa [#allocation4], 0
    %s15 = scalar_lea.sflag [#allocation4], 1
    %16 = vsyncpa %s15, 0
    loop: start=0, step=1, limit=4
    $region2: #{tpu_custom_call.1} parent=1 // loop_pre_header
      _
    $region3: #{tpu_custom_call.1} parent=1 // loop_header
      %s18 = sphi 0, %s22
      %p19 = scmp.ge.s32.totalorder %s18, 4
      %s28 = sphi 0, %s30
      %s31 = sphi 0, %s28
      %s32 = sphi 0, %s31
      %s48 = sphi 0, %s32
      %s54 = sphi 0, %s56
      %s57 = sphi 0, %s54
      %s58 = sphi 0, %s57
      %s74 = sphi 0, %s58
      %s78 = sphi 0, %s78
      %s80 = sphi 0, %s78
      %s81 = sphi 0, %s80
      %s95 = sphi 0, %s81
      %s101 = sphi 0, %s103
      %s104 = sphi 0, %s101
      %s105 = sphi 0, %s104
      %s121 = sphi 0, %s105
    $region4: #{tpu_custom_call.1} parent=1 // loop_header_branch
      %21 = sbr.rel (%p19) target = $region8
    $region5: #{tpu_custom_call.1} parent=1 // loop_body
      %s23 = ssub.s32 %s18, 1
      %s24 = ssub.s32 %s18, 2
      %s25 = sadd.s32 %s18, 1
      %s26 = ssub.s32 %s18, %s25
      %p27 = scmp.eq.s32.totalorder %s26, 0
      %s29 = sadd.s32 %s28, 1
      %s30 = scalar_select %p27, %s28, %s29
      %p33 = pneg %p27
      %p34 = scmp.eq.s32.totalorder %s18, 1
      %p35 = por %p33, %p34
      %p36 = scmp.ne.s32.totalorder %s28, %s31
      %p37 = scmp.eq.s32.totalorder %s18, 0
      %p38 = por %p36, %p37
      %p39 = scmp.ne.s32.totalorder %s28, %s31
      %p40 = scmp.eq.s32.totalorder %s23, 1
      %p41 = por %p39, %p40
      %p42 = scmp.ne.s32.totalorder %s31, %s32
      %p43 = scmp.eq.s32.totalorder %s23, 0
      %p44 = por %p42, %p43
      %p45 = scmp.ne.s32.totalorder %s31, %s32
      %p46 = scmp.eq.s32.totalorder %s24, 1
      %p47 = por %p45, %p46
      %p49 = scmp.ne.s32.totalorder %s32, %s48
      %p50 = scmp.eq.s32.totalorder %s24, 0
      %p51 = por %p49, %p50
      %s52 = ssub.s32 %s18, %s25
      %p53 = scmp.eq.s32.totalorder %s52, 0
      %s55 = sadd.s32 %s54, 1
      %s56 = scalar_select %p53, %s54, %s55
      %p59 = pneg %p53
      %p60 = scmp.eq.s32.totalorder %s18, 1
      %p61 = por %p59, %p60
      %p62 = scmp.ne.s32.totalorder %s54, %s57
      %p63 = scmp.eq.s32.totalorder %s18, 0
      %p64 = por %p62, %p63
      %p65 = scmp.ne.s32.totalorder %s54, %s57
      %p66 = scmp.eq.s32.totalorder %s23, 1
      %p67 = por %p65, %p66
      %p68 = scmp.ne.s32.totalorder %s57, %s58
      %p69 = scmp.eq.s32.totalorder %s23, 0
      %p70 = por %p68, %p69
      %p71 = scmp.ne.s32.totalorder %s57, %s58
      %p72 = scmp.eq.s32.totalorder %s24, 1
      %p73 = por %p71, %p72
      %p75 = scmp.ne.s32.totalorder %s58, %s74
      %p76 = scmp.eq.s32.totalorder %s24, 0
      %p77 = por %p75, %p76
      %s79 = sadd.s32 %s78, 1
      %p82 = scmp.eq.s32.totalorder %s18, 1
      %p83 = scmp.ne.s32.totalorder %s78, %s80
      %p84 = scmp.eq.s32.totalorder %s18, 0
      %p85 = por %p83, %p84
      %p86 = scmp.ne.s32.totalorder %s78, %s80
      %p87 = scmp.eq.s32.totalorder %s23, 1
      %p88 = por %p86, %p87
      %p89 = scmp.ne.s32.totalorder %s80, %s81
      %p90 = scmp.eq.s32.totalorder %s23, 0
      %p91 = por %p89, %p90
      %p92 = scmp.ne.s32.totalorder %s80, %s81
      %p93 = scmp.eq.s32.totalorder %s24, 1
      %p94 = por %p92, %p93
      %p96 = scmp.ne.s32.totalorder %s81, %s95
      %p97 = scmp.eq.s32.totalorder %s24, 0
      %p98 = por %p96, %p97
      %s99 = ssub.s32 %s18, %s25
      %p100 = scmp.eq.s32.totalorder %s99, 0
      %s102 = sadd.s32 %s101, 1
      %s103 = scalar_select %p100, %s101, %s102
      %p106 = pneg %p100
      %p107 = scmp.eq.s32.totalorder %s18, 1
      %p108 = por %p106, %p107
      %p109 = scmp.ne.s32.totalorder %s101, %s104
      %p110 = scmp.eq.s32.totalorder %s18, 0
      %p111 = por %p109, %p110
      %p112 = scmp.ne.s32.totalorder %s101, %s104
      %p113 = scmp.eq.s32.totalorder %s23, 1
      %p114 = por %p112, %p113
      %p115 = scmp.ne.s32.totalorder %s104, %s105
      %p116 = scmp.eq.s32.totalorder %s23, 0
      %p117 = por %p115, %p116
      %p118 = scmp.ne.s32.totalorder %s104, %s105
      %p119 = scmp.eq.s32.totalorder %s24, 1
      %p120 = por %p118, %p119
      %p122 = scmp.ne.s32.totalorder %s105, %s121
      %p123 = scmp.eq.s32.totalorder %s24, 0
      %p124 = por %p122, %p123
      %p125 = scmp.le.s32.totalorder 1, %s18
      %p126 = scmp.lt.s32.totalorder %s18, 3
      %p127 = pnand %p125, %p126
      %p128 = pneg %p127
      // Predicated region
      $region9: #{tpu_custom_call.1} parent=5 // pred_check
        _
      $region10: #{tpu_custom_call.1} parent=5 // pred_check_branch
        %130 = sbr.rel (%p127) target = $region12
      $region11: #{tpu_custom_call.1} parent=5 // pred_region
        %s131 = ssub.s32 %s18, 1
        // Predicated region
        $region13: #{tpu_custom_call.1} parent=11 // pred_check
          %p132 = pneg %p91
        $region14: #{tpu_custom_call.1} parent=11 // pred_check_branch
          %134 = sbr.rel (%p132) target = $region16
        $region15: #{tpu_custom_call.1} parent=11 // pred_region
          _
        $region16: #{tpu_custom_call.1} parent=11 // pred_fallthru
          _
      $region12: #{tpu_custom_call.1} parent=5 // pred_fallthru
        _
      %p135 = scmp.lt.s32.totalorder %s18, 2
      // Predicated region
      $region17: #{tpu_custom_call.1} parent=5 // pred_check
        %p136 = pneg %p135
      $region18: #{tpu_custom_call.1} parent=5 // pred_check_branch
        %138 = sbr.rel (%p136) target = $region20
      $region19: #{tpu_custom_call.1} parent=5 // pred_region
        // Predicated region
        $region21: #{tpu_custom_call.1} parent=19 // pred_check
          %p139 = pneg %p38
        $region22: #{tpu_custom_call.1} parent=19 // pred_check_branch
          %141 = sbr.rel (%p139) target = $region24
        $region23: #{tpu_custom_call.1} parent=19 // pred_region
          %s142 = sand.u32 %s28, 1
          %s143 = scalar_lea.sflag [#allocation3], %s142
          %s144 = sand.u32 %s28, 1
          %s145 = smul.addr %s144, 32
          %s146 = scalar_lea.vmem [#allocation2], %s145
          %s148 = ssub.s32 512, 512
          %149 = vsyncadd %s143, %s148
          %s150 = smul.addr %s18, 4
          %s151 = smul.addr %s150, 128
          %s152 = scalar_lea.hbm %s0, %s151
          %s153 = sshll.u32 %s146, 4
          %s154 = int_to_ptr.vmem [resolvable:$true] %s153
          %159 = dma.hbm_to_vmem [thread:$0]  %s152, 512, %s154, %s143, 256, 256, 16
        $region24: #{tpu_custom_call.1} parent=19 // pred_fallthru
          _
        // Predicated region
        $region25: #{tpu_custom_call.1} parent=19 // pred_check
          %p160 = pneg %p64
        $region26: #{tpu_custom_call.1} parent=19 // pred_check_branch
          %162 = sbr.rel (%p160) target = $region28
        $region27: #{tpu_custom_call.1} parent=19 // pred_region
          %s163 = sand.u32 %s54, 1
          %s164 = scalar_lea.sflag [#allocation6], %s163
          %s165 = sand.u32 %s54, 1
          %s166 = smul.addr %s165, 32
          %s167 = scalar_lea.vmem [#allocation5], %s166
          %s169 = ssub.s32 512, 512
          %170 = vsyncadd %s164, %s169
          %s171 = smul.addr %s18, 4
          %s172 = smul.addr %s171, 128
          %s173 = scalar_lea.hbm %s1, %s172
          %s174 = sshll.u32 %s167, 4
          %s175 = int_to_ptr.vmem [resolvable:$true] %s174
          %180 = dma.hbm_to_vmem [thread:$0]  %s173, 512, %s175, %s164, 256, 256, 16
        $region28: #{tpu_custom_call.1} parent=19 // pred_fallthru
          _
      $region20: #{tpu_custom_call.1} parent=5 // pred_fallthru
        _
      %p181 = scmp.le.s32.totalorder 1, %s18
      %p182 = scmp.lt.s32.totalorder %s18, 3
      %p183 = pnand %p181, %p182
      %p184 = pneg %p183
      // Predicated region
      $region29: #{tpu_custom_call.1} parent=5 // pred_check
        _
      $region30: #{tpu_custom_call.1} parent=5 // pred_check_branch
        %186 = sbr.rel (%p183) target = $region32
      $region31: #{tpu_custom_call.1} parent=5 // pred_region
        %s187 = ssub.s32 %s18, 1
        %s188 = sand.u32 %s31, 1
        %s189 = scalar_lea.sflag [#allocation3], %s188
        %s190 = sand.u32 %s31, 1
        %s191 = smul.addr %s190, 32
        %s192 = scalar_lea.vmem [#allocation2], %s191
        // Predicated region
        $region33: #{tpu_custom_call.1} parent=31 // pred_check
          %p193 = pneg %p44
        $region34: #{tpu_custom_call.1} parent=31 // pred_check_branch
          %195 = sbr.rel (%p193) target = $region36
        $region35: #{tpu_custom_call.1} parent=31 // pred_region
          %196 = dma.done %s189, 512
        $region36: #{tpu_custom_call.1} parent=31 // pred_fallthru
          _
        %s197 = sand.u32 %s57, 1
        %s198 = scalar_lea.sflag [#allocation6], %s197
        %s199 = sand.u32 %s57, 1
        %s200 = smul.addr %s199, 32
        %s201 = scalar_lea.vmem [#allocation5], %s200
        // Predicated region
        $region37: #{tpu_custom_call.1} parent=31 // pred_check
          %p202 = pneg %p70
        $region38: #{tpu_custom_call.1} parent=31 // pred_check_branch
          %204 = sbr.rel (%p202) target = $region40
        $region39: #{tpu_custom_call.1} parent=31 // pred_region
          %205 = dma.done %s198, 512
        $region40: #{tpu_custom_call.1} parent=31 // pred_fallthru
          _
        %s206 = sand.u32 %s31, 1
        %s207 = scalar_lea.sflag [#allocation3], %s206
        %s208 = sand.u32 %s31, 1
        %s209 = smul.addr %s208, 32
        %s210 = scalar_lea.vmem [#allocation2], %s209
        %p211 = pneg %p44
        %p212 = pneg %p41
        %s213 = sand.u32 %s57, 1
        %s214 = scalar_lea.sflag [#allocation6], %s213
        %s215 = sand.u32 %s57, 1
        %s216 = smul.addr %s215, 32
        %s217 = scalar_lea.vmem [#allocation5], %s216
        %p218 = pneg %p70
        %p219 = pneg %p67
        %p220 = pneg %p91
        %p221 = pneg %p88
        %p222 = pneg %p117
        %p223 = pneg %p114
        %s224 = sand.u32 %s104, 1
        %s225 = scalar_lea.sflag [#allocation4], %s224
        %s226 = sand.u32 %s104, 1
        %s227 = scalar_lea.vmem [#allocation7], %s226
        %v228 = vld [vmem:[%s192] sm:$0xff]
        %v229 = vld [vmem:[%s192 + $0x8] sm:$0xff]
        %v230 = vld [vmem:[%s192] sm:$0xfe]
        %v231 = vld [vmem:[%s192 + $0x8] sm:$0xfe]
        %v232 = vld [vmem:[%s192 + $0x10] sm:$0x1]
        %v233 = vld [vmem:[%s192 + $0x18] sm:$0x1]
        %v234 = vld [vmem:[%s192] sm:$0xfc]
        %v235 = vld [vmem:[%s192 + $0x8] sm:$0xfc]
        %v236 = vld [vmem:[%s192 + $0x10] sm:$0x3]
        %v237 = vld [vmem:[%s192 + $0x18] sm:$0x3]
        %vm242 = vcmask 1046528
        %v243 = vrot.slane %v230, 1
        %v244 = vrot.slane %v232, 1
        %v245 = vsel %vm242, %v243, %v244
        %v246 = vrot.slane %v231, 1
        %v247 = vrot.slane %v233, 1
        %v248 = vsel %vm242, %v246, %v247
        %v251 = vadd.f32 %v228, %v245
        %v252 = vadd.f32 %v229, %v248
        %vm257 = vcmask 1045504
        %v258 = vrot.slane %v234, 2
        %v259 = vrot.slane %v236, 2
        %v260 = vsel %vm257, %v258, %v259
        %v261 = vrot.slane %v235, 2
        %v262 = vrot.slane %v237, 2
        %v263 = vsel %vm257, %v261, %v262
        %v266 = vadd.f32 %v251, %v260
        %v267 = vadd.f32 %v252, %v263
        %270 = vrot.lane.b32.xlu0 %v266, 126
        %v271 = vpop.permute.xlu0 %270
        %272 = vrot.lane.b32.xlu0 %v267, 126
        %v273 = vpop.permute.xlu0 %272
        %vm274 = vcmask 1031168
        %v275 = vsel %vm274, %v271, %v273
        %v277 = vsub.f32 %v266, %v275
        %v278 = vsub.f32 %v228, %v260
        %v279 = vsub.f32 %v229, %v263
        %282 = vrot.lane.b32.xlu0 %v278, 127
        %v283 = vpop.permute.xlu0 %282
        %284 = vrot.lane.b32.xlu0 %v279, 127
        %v285 = vpop.permute.xlu0 %284
        %vm286 = vcmask 1039360
        %v287 = vsel %vm286, %v283, %v285
        %v289 = vadd.f32 %v278, %v287
        %290 = vrot.lane.b32.xlu0 %v278, 126
        %v291 = vpop.permute.xlu0 %290
        %292 = vrot.lane.b32.xlu0 %v279, 126
        %v293 = vpop.permute.xlu0 %292
        %v294 = vsel %vm274, %v291, %v293
        %v296 = vadd.f32 %v289, %v294
        %v297 = vmul.f32 %v277, %v277
        %v298 = vmul.f32 %v296, %v296
        %v299 = vadd.f32 %v297, %v298
        %v300 = vld [vmem:[%s201] sm:$0xff]
        %v301 = vld [vmem:[%s201 + $0x8] sm:$0xff]
        %v302 = vld [vmem:[%s201] sm:$0xfe]
        %v303 = vld [vmem:[%s201 + $0x8] sm:$0xfe]
        %v304 = vld [vmem:[%s201 + $0x10] sm:$0x1]
        %v305 = vld [vmem:[%s201 + $0x18] sm:$0x1]
        %v306 = vld [vmem:[%s201] sm:$0xfc]
        %v307 = vld [vmem:[%s201 + $0x8] sm:$0xfc]
        %v308 = vld [vmem:[%s201 + $0x10] sm:$0x3]
        %v309 = vld [vmem:[%s201 + $0x18] sm:$0x3]
        %v314 = vrot.slane %v302, 1
        %v315 = vrot.slane %v304, 1
        %v316 = vsel %vm242, %v314, %v315
        %v317 = vrot.slane %v303, 1
        %v318 = vrot.slane %v305, 1
        %v319 = vsel %vm242, %v317, %v318
        %v322 = vadd.f32 %v300, %v316
        %v323 = vadd.f32 %v301, %v319
        %v328 = vrot.slane %v306, 2
        %v329 = vrot.slane %v308, 2
        %v330 = vsel %vm257, %v328, %v329
        %v331 = vrot.slane %v307, 2
        %v332 = vrot.slane %v309, 2
        %v333 = vsel %vm257, %v331, %v332
        %v336 = vadd.f32 %v322, %v330
        %v337 = vadd.f32 %v323, %v333
        %340 = vrot.lane.b32.xlu0 %v336, 126
        %v341 = vpop.permute.xlu0 %340
        %342 = vrot.lane.b32.xlu0 %v337, 126
        %v343 = vpop.permute.xlu0 %342
        %v344 = vsel %vm274, %v341, %v343
        %v346 = vsub.f32 %v336, %v344
        %v347 = vsub.f32 %v300, %v330
        %v348 = vsub.f32 %v301, %v333
        %351 = vrot.lane.b32.xlu0 %v347, 127
        %v352 = vpop.permute.xlu0 %351
        %353 = vrot.lane.b32.xlu0 %v348, 127
        %v354 = vpop.permute.xlu0 %353
        %v355 = vsel %vm286, %v352, %v354
        %v357 = vadd.f32 %v347, %v355
        %358 = vrot.lane.b32.xlu0 %v347, 126
        %v359 = vpop.permute.xlu0 %358
        %360 = vrot.lane.b32.xlu0 %v348, 126
        %v361 = vpop.permute.xlu0 %360
        %v362 = vsel %vm274, %v359, %v361
        %v364 = vadd.f32 %v357, %v362
        %v365 = vmul.f32 %v346, %v346
        %v366 = vmul.f32 %v364, %v364
        %v367 = vadd.f32 %v365, %v366
        %v368 = vmul.f32 %v299, %v367
        %v369 = vrsqrt.pop %v368
        %v370 = vmul.f32 %v368, %v369
        %vm371 = vcmp.eq.f32.partialorder %v368, inf
        %v372 = vsel %vm371, %v368, %v370
        %vm373 = vcmp.eq.f32.partialorder %v368, 0.0
        %v374 = vand.u32 %v368, 2147483648
        %v375 = vsel %vm373, %v374, %v372
        %v376 = vmul.f32 %v375, 2.0
        %v377 = vadd.f32 %v376, 0.023529412
        %v378 = vadd.f32 %v299, %v367
        %v379 = vadd.f32 %v378, 0.023529412
        %v380 = vrcp.pop %v379
        %v381 = vmul.f32 %v379, %v380
        %v382 = vsub.f32 2.0, %v381
        %v383 = vmul.f32 %v380, %v382
        %v384 = vmul.f32 %v377, %v383
        %v385 = vld [vmem:[%s2] sm:$0x1]
        %v386 = vsub.f32 %v384, 1.0
        %v388 = vlaneseq
        %v389 = vshrl.u32 %v388, 7
        %v390 = vsub.s32 0, %v389
        %v391 = vrot.slane %v385, %v390
        %v393 = vmul.f32 %v386, %v391
        %394 = vadd.xlane.f32.xlu0 %v393
        %v395 = vpop.xlane.xlu0 %394
        %v396 = vrot.slane %v395, 4
        %v397 = vadd.f32 %v395, %v396
        %v398 = vrot.slane %v397, 2
        %v399 = vadd.f32 %v397, %v398
        %v400 = vrot.slane %v399, 1
        %v401 = vadd.f32 %v399, %v400
        %v402 = vmul.f32 %v393, %v393
        %403 = vadd.xlane.f32.xlu0 %v402
        %v404 = vpop.xlane.xlu0 %403
        %v405 = vrot.slane %v404, 4
        %v406 = vadd.f32 %v404, %v405
        %v407 = vrot.slane %v406, 2
        %v408 = vadd.f32 %v406, %v407
        %v409 = vrot.slane %v408, 1
        %v410 = vadd.f32 %v408, %v409
        %v411 = vmul.f32 %v401, %v401
        %v412 = vmul.f32 %v411, 0.015625
        %v413 = vsub.f32 %v410, %v412
        %v414 = vmul.f32 %v413, 0.015873017
        %v415 = vmax.f32 %v414, 0.0
        %v416 = vrsqrt.pop %v415
        %v417 = vmul.f32 %v415, %v416
        %vm418 = vcmp.eq.f32.partialorder %v415, inf
        %v419 = vsel %vm418, %v415, %v417
        %vm420 = vcmp.eq.f32.partialorder %v415, 0.0
        %v421 = vand.u32 %v415, 2147483648
        %v422 = vsel %vm420, %v421, %v419
        %423 = vst [vmem:[%s227] sm:$0x1] %v422
        %s424 = sand.u32 %s104, 1
        %s425 = scalar_lea.sflag [#allocation4], %s424
        %s426 = sand.u32 %s104, 1
        %s427 = scalar_lea.vmem [#allocation7], %s426
        // Predicated region
        $region41: #{tpu_custom_call.1} parent=31 // pred_check
          %p428 = pneg %p114
        $region42: #{tpu_custom_call.1} parent=31 // pred_check_branch
          %430 = sbr.rel (%p428) target = $region44
        $region43: #{tpu_custom_call.1} parent=31 // pred_region
          %s432 = ssub.s32 16, 16
          %433 = vsyncadd %s425, %s432
          %s434 = smul.addr %s23, 16
          %s435 = scalar_lea.hbm %s3, %s434
          %s437 = sshll.u32 %s427, 4
          %s438 = int_to_ptr.vmem [resolvable:$true] %s437
          %440 = dma.vmem_to_hbm [thread:$0]  %s438, 16, %s435, %s425
        $region44: #{tpu_custom_call.1} parent=31 // pred_fallthru
          _
      $region32: #{tpu_custom_call.1} parent=5 // pred_fallthru
        _
      %p441 = scmp.le.s32.totalorder 2, %s18
      // Predicated region
      $region45: #{tpu_custom_call.1} parent=5 // pred_check
        %p442 = pneg %p441
      $region46: #{tpu_custom_call.1} parent=5 // pred_check_branch
        %444 = sbr.rel (%p442) target = $region48
      $region47: #{tpu_custom_call.1} parent=5 // pred_region
        %s445 = ssub.s32 %s18, 2
        // Predicated region
        $region49: #{tpu_custom_call.1} parent=47 // pred_check
          %p446 = pneg %p120
        $region50: #{tpu_custom_call.1} parent=47 // pred_check_branch
          %448 = sbr.rel (%p446) target = $region52
        $region51: #{tpu_custom_call.1} parent=47 // pred_region
          %s449 = sand.u32 %s105, 1
          %s450 = scalar_lea.sflag [#allocation4], %s449
          %s451 = sand.u32 %s105, 1
          %s452 = scalar_lea.vmem [#allocation7], %s451
          %453 = dma.done %s450, 16
        $region52: #{tpu_custom_call.1} parent=47 // pred_fallthru
          _
      $region48: #{tpu_custom_call.1} parent=5 // pred_fallthru
        _
    $region6: #{tpu_custom_call.1} parent=1 // loop_footer
      %s22 = sadd.s32 1, %s18
    $region7: #{tpu_custom_call.1} parent=1 // loop_footer_branch
      %17 = sbr.rel target = $region3
    $region8: #{tpu_custom_call.1} parent=1 // loop_exit
      _
    %454 = vsyncpa [#allocation3], 1
    %s455 = scalar_lea.sflag [#allocation3], 1
    %456 = vsyncpa %s455, 1
    %457 = vsyncpa [#allocation6], 1
    %s458 = scalar_lea.sflag [#allocation6], 1
    %459 = vsyncpa %s458, 1
    %460 = vsyncpa [#allocation4], 1
    %s461 = scalar_lea.sflag [#allocation4], 1
    %462 = vsyncpa %s461, 1

</llo_original>
